<compile_context>
chip_gen: v6e
topology: v6e:2x2x1
jax: 0.10.0
libtpu: 0.0.40
codegen_flags: <defaults>
</compile_context>

<pallas_src>
import jax
import jax.numpy as jnp
from jax import lax
from jax.experimental import pallas as pl
from jax.experimental.pallas import tpu as pltpu


_NEG_LARGE = -1e30                       # finite "-inf": no inf-inf NaNs
_VMEM_BUDGET = 40 * 1024 * 1024          # conservative tile budget (v7x: 64 MiB)
_VMEM_LIMIT_CAP = 48 * 1024 * 1024       # never claim all of v7x's VMEM


def _lse_kernel(x_ref, w_ref, b_ref, out_ref, m_s, l_s):
    k = pl.program_id(1)

    # Reset the online-softmax accumulators at the start of each K sweep.
    @pl.when(k == 0)
    def _():
        m_s[...] = jnp.full(m_s.shape, _NEG_LARGE, jnp.float32)
        l_s[...] = jnp.zeros(l_s.shape, jnp.float32)

    # (TK, E) x (TB, E) -> (TK, TB): classes on sublanes, batch on lanes.
    # Contracting the last dims of both operands feeds the MXU directly from
    # the native (K, E) weight layout (no in-kernel transpose of W or x).
    logits = lax.dot_general(
        w_ref[...], x_ref[...],
        dimension_numbers=(((1,), (1,)), ((), ())),
        preferred_element_type=jnp.float32,
    )
    logits = logits + b_ref[...]          # (TK, 1); padded classes carry -1e30

    # Online logsumexp along the class (sublane) axis -> lane-dense (1, TB).
    m_prev = m_s[...]
    m_new = jnp.maximum(m_prev, jnp.max(logits, axis=0, keepdims=True))
    alpha = jnp.exp(m_prev - m_new)
    p = jnp.exp(logits - m_new)           # padded classes underflow to 0
    l_s[...] = alpha * l_s[...] + jnp.sum(p, axis=0, keepdims=True)
    m_s[...] = m_new

    # Finalize: write the per-row LSE for this batch tile (lane-dense block).
    @pl.when(k == pl.num_programs(1) - 1)
    def _():
        lse = m_s[...] + jnp.log(l_s[...])             # (1, TB)
        out_ref[...] = lse.reshape(1, 1, lse.shape[-1])


def _round_up(a, m):
    return (a + m - 1) // m * m


def _vmem_estimate(tb, tk, e_pad, mm_itemsize, w_bufs):
    x_tiles = 2 * tb * e_pad * mm_itemsize        # double-buffered activations
    w_tiles = w_bufs * tk * e_pad * mm_itemsize   # streamed classifier weight
    bias = 2 * tk * 4
    logits = 4 * tb * tk * 4                      # f32 logits / exp temporaries
    small = 4 * tb * 4 + 4096                     # accumulators + output block
    return x_tiles + w_tiles + bias + logits + small


def _select_tiles(B, K, e_pad, mm_itemsize, w_bufs):
    tk = min(512, _round_up(K, 128))
    # Keep >= 2 batch tiles whenever B permits so the "parallel" batch axis
    # shards across v7x's two TensorCores; cap TB at 1024 (W HBM traffic
    # scales as ceil(B/TB) * K * E, so bigger is better until VMEM binds).
    tb = min(1024, max(8, _round_up(B, 16) // 2))
    while tb > 8 and _vmem_estimate(tb, tk, e_pad, mm_itemsize, w_bufs) > _VMEM_BUDGET:
        tb = max(8, _round_up(tb // 2, 8))
    while tk > 128 and _vmem_estimate(tb, tk, e_pad, mm_itemsize, w_bufs) > _VMEM_BUDGET:
        tk = max(128, _round_up(tk // 2, 128))
    if tb >= 256:                                 # MXU-friendly (v6e 2x256^2)
        tb = tb // 256 * 256
    return tb, tk


def _input_spec(block_shape, index_map, buffers=2):
    """BlockSpec with optional deeper multi-buffering (graceful fallback)."""
    if buffers > 2:
        try:
            return pl.BlockSpec(block_shape, index_map,
                                pipeline_mode=pl.Buffered(buffers))
        except Exception:      # older jax without pipeline_mode / Buffered
            pass
    return pl.BlockSpec(block_shape, index_map)


def cross_entropy_loss(x, weight, bias, targets, *, eps=0.1, label_smooth=True,
                       tile_b=None, tile_k=None, matmul_dtype=jnp.bfloat16):
    """Forward of the reference label-smoothed CrossEntropyLoss module.

    x:       (B, E) activations.
    weight:  (K, E) classifier weight (torch.nn.Linear layout).
    bias:    (K,)   classifier bias.
    targets: (B,)   int class indices.
    """
    B, E = x.shape
    K, E2 = weight.shape
    assert E == E2
    eps_val = float(eps) if label_smooth else 0.0

    x_f32 = x.astype(jnp.float32)
    w_f32 = weight.astype(jnp.float32)
    b_f32 = bias.astype(jnp.float32)
    tgt = targets.astype(jnp.int32)

    # ---- Hoisted O(B*E) loss terms, computed in full f32 in plain JAX ------
    sum_logits = x_f32 @ jnp.sum(w_f32, axis=0) + jnp.sum(b_f32)     # sum_j z_ij
    tgt_logits = jnp.sum(x_f32 * w_f32[tgt], axis=1) + b_f32[tgt]    # z_{i,t_i}

    # ---- Kernel inputs: pad E/K/B; mask padded classes via -1e30 bias ------
    mm_dtype = jnp.dtype(matmul_dtype) if matmul_dtype is not None else jnp.dtype(x.dtype)
    w_bufs = 3                                     # deepened W input pipeline
    e_pad = _round_up(E, 128)
    tb, tk = _select_tiles(B, K, e_pad, mm_dtype.itemsize, w_bufs)
    if tile_b is not None:
        tb = _round_up(int(tile_b), 8)
    if tile_k is not None:
        tk = _round_up(int(tile_k), 128)
    b_pad = _round_up(B, tb)
    k_pad = _round_up(K, tk)
    nb, nk = b_pad // tb, k_pad // tk

    x_mm = jnp.pad(x.astype(mm_dtype), ((0, b_pad - B), (0, e_pad - E)))
    w_mm = jnp.pad(weight.astype(mm_dtype), ((0, k_pad - K), (0, e_pad - E)))
    bias_col = jnp.full((k_pad, 1), _NEG_LARGE, jnp.float32)
    bias_col = bias_col.at[:K, 0].set(b_f32)

    est = _vmem_estimate(tb, tk, e_pad, mm_dtype.itemsize, w_bufs)
    vmem_limit = int(min(max(2 * est, 16 * 1024 * 1024), _VMEM_LIMIT_CAP))

    cost = pl.CostEstimate(
        flops=2 * b_pad * k_pad * e_pad,
        transcendentals=b_pad * k_pad,
        bytes_accessed=(b_pad * e_pad * mm_dtype.itemsize       # x: read once
                        + nb * k_pad * e_pad * mm_dtype.itemsize  # W: per B tile
                        + nb * k_pad * 4                          # bias
                        + b_pad * 4),                             # per-row LSE
    )

    def _run(n_w_bufs):
        return pl.pallas_call(
            _lse_kernel,
            out_shape=jax.ShapeDtypeStruct((nb, 1, tb), jnp.float32),
            grid_spec=pltpu.PrefetchScalarGridSpec(
                num_scalar_prefetch=0,
                grid=(nb, nk),
                in_specs=[
                    pl.BlockSpec((tb, e_pad), lambda b, k: (b, 0)),  # x: resident over K
                    _input_spec((tk, e_pad), lambda b, k: (k, 0),
                                buffers=n_w_bufs),                    # W: streamed
                    pl.BlockSpec((tk, 1), lambda b, k: (k, 0)),      # bias column
                ],
                out_specs=pl.BlockSpec((1, 1, tb), lambda b, k: (b, 0, 0)),
                scratch_shapes=[pltpu.VMEM((1, tb), jnp.float32)] * 2,  # m, l
            ),
            compiler_params=pltpu.CompilerParams(
                dimension_semantics=("parallel", "arbitrary"),
                vmem_limit_bytes=vmem_limit,
            ),
            cost_estimate=cost,
        )(x_mm, w_mm, bias_col)

    try:
        lse_tiles = _run(w_bufs)
    except Exception:          # deeper W buffering unsupported -> default depth
        lse_tiles = _run(2)

    # ---- Combine (second reduction stage, plain JAX) ------------------------
    lse = lse_tiles.reshape(b_pad)[:B]
    row_loss = lse - (1.0 - eps_val) * tgt_logits - (eps_val / K) * sum_logits
    return jnp.mean(row_loss)


if __name__ == "__main__":
    # Small shapes that still exercise a multi-tile grid with both batch
    # padding (24 -> 32) and class padding (300 -> 384) paths active.
    batch, embedding_dim, num_classes = 24, 64, 300
    key = jax.random.PRNGKey(0)
    kx, kw, kt = jax.random.split(key, 3)

    x = jax.random.normal(kx, (batch, embedding_dim), dtype=jnp.float32)
    # nn.init.normal_(weight, 0, 0.01); nn.init.constant_(bias, 0)
    weight = 0.01 * jax.random.normal(kw, (num_classes, embedding_dim), dtype=jnp.float32)
    bias = jnp.zeros((num_classes,), dtype=jnp.float32)
    targets = jax.random.randint(kt, (batch,), 0, num_classes, dtype=jnp.int32)

    # Pure-JAX f32 reference (same math as the torch module's forward).
    logits_ref = x @ weight.T + bias
    logp_ref = jax.nn.log_softmax(logits_ref, axis=1)
    onehot_ref = jax.nn.one_hot(targets, num_classes, dtype=jnp.float32)
    smoothed_ref = 0.9 * onehot_ref + 0.1 / num_classes
    loss_ref = jnp.sum(jnp.mean(-smoothed_ref * logp_ref, axis=0))

    # Explicit small tiles: grid (2, 3), exercises the online accumulator path.
    loss_tiled = cross_entropy_loss(x, weight, bias, targets, eps=0.1,
                                    label_smooth=True, tile_b=16, tile_k=128)
    # Auto-selected tiles.
    loss_auto = cross_entropy_loss(x, weight, bias, targets, eps=0.1,
                                   label_smooth=True)
    loss_tiled = jax.block_until_ready(loss_tiled)
    loss_auto = jax.block_until_ready(loss_auto)

    # Tolerance accounts for the bf16 matmul feeding the LSE (hoisted terms
    # are full f32); expected error is ~1e-4 on a loss of ~log(300).
    assert jnp.allclose(loss_tiled, loss_ref, rtol=1e-3, atol=1e-3), (loss_tiled, loss_ref)
    assert jnp.allclose(loss_auto, loss_ref, rtol=1e-3, atol=1e-3), (loss_auto, loss_ref)

    print("KERNEL_OK")
</pallas_src>

<mosaic_0001>
module attributes {stable_mosaic.version = 11 : i64} {
  func.func @_lse_kernel(%arg0: i32, %arg1: i32, %arg2: memref<16x128xbf16, #tpu.memory_space<vmem>>, %arg3: memref<128x128xbf16, #tpu.memory_space<vmem>>, %arg4: memref<128x1xf32, #tpu.memory_space<vmem>>, %arg5: memref<1x1x16xf32, #tpu.memory_space<vmem>>, %arg6: memref<1x16xf32, #tpu.memory_space<vmem>>, %arg7: memref<1x16xf32, #tpu.memory_space<vmem>>) attributes {dimension_semantics = [#tpu.dimension_semantics<parallel>, #tpu.dimension_semantics<arbitrary>], iteration_bounds = array<i64: 2, 3>, scalar_prefetch = 0 : i64, scratch_operands = 2 : i64, tpu.core_type = #tpu.core_type<tc>, window_params = [{transform_indices = @transform_0, window_bounds = array<i64: 16, 128>}, {transform_indices = @transform_1, window_bounds = array<i64: 128, 128>}, {transform_indices = @transform_2, window_bounds = array<i64: 128, 1>}, {transform_indices = @transform_3, window_bounds = array<i64: 1, 1, 16>}]} {
    %c0_i32 = arith.constant 0 : i32
    %0 = arith.cmpi eq, %arg1, %c0_i32 : i32
    %1 = arith.extui %0 : i1 to i32
    %c0_i32_0 = arith.constant 0 : i32
    %2 = arith.cmpi ne, %1, %c0_i32_0 : i32
    scf.if %2 {
      %cst_17 = arith.constant -1.000000e+30 : f32
      %28 = vector.broadcast %cst_17 : f32 to vector<1x16xf32>
      %c0_18 = arith.constant 0 : index
      %c0_19 = arith.constant 0 : index
      %29 = vector.load %arg6[%c0_18, %c0_19] : memref<1x16xf32, #tpu.memory_space<vmem>>, vector<1x16xf32>
      tpu.vector_store %arg6[%c0_18, %c0_19], %28 {strides = array<i32>} : memref<1x16xf32, #tpu.memory_space<vmem>>, vector<1x16xf32>,
      %cst_20 = arith.constant 0.000000e+00 : f32
      %30 = vector.broadcast %cst_20 : f32 to vector<1x16xf32>
      %c0_21 = arith.constant 0 : index
      %c0_22 = arith.constant 0 : index
      %31 = vector.load %arg7[%c0_21, %c0_22] : memref<1x16xf32, #tpu.memory_space<vmem>>, vector<1x16xf32>
      tpu.vector_store %arg7[%c0_21, %c0_22], %30 {strides = array<i32>} : memref<1x16xf32, #tpu.memory_space<vmem>>, vector<1x16xf32>,
    } else {
    }
    %c0 = arith.constant 0 : index
    %c0_1 = arith.constant 0 : index
    %3 = vector.load %arg3[%c0, %c0_1] : memref<128x128xbf16, #tpu.memory_space<vmem>>, vector<128x128xbf16>
    %c0_2 = arith.constant 0 : index
    %c0_3 = arith.constant 0 : index
    %4 = vector.load %arg2[%c0_2, %c0_3] : memref<16x128xbf16, #tpu.memory_space<vmem>>, vector<16x128xbf16>
    %cst = arith.constant dense<0.000000e+00> : vector<128x16xf32>
    %5 = tpu.matmul %3, %4, %cst {dimension_numbers = #tpu.dot_dimension_numbers<[1], [1], [0], [0], [0, 0, 1, 0], [], []>} : vector<128x128xbf16>, vector<16x128xbf16>, vector<128x16xf32> -> vector<128x16xf32>
    %c0_4 = arith.constant 0 : index
    %c0_5 = arith.constant 0 : index
    %6 = vector.load %arg4[%c0_4, %c0_5] : memref<128x1xf32, #tpu.memory_space<vmem>>, vector<128x1xf32>
    %7 = vector.broadcast %6 : vector<128x1xf32> to vector<128x16xf32>
    %8 = arith.addf %5, %7 : vector<128x16xf32>
    %c0_6 = arith.constant 0 : index
    %c0_7 = arith.constant 0 : index
    %9 = vector.load %arg6[%c0_6, %c0_7] : memref<1x16xf32, #tpu.memory_space<vmem>>, vector<1x16xf32>
    %cst_8 = arith.constant dense<0xFF800000> : vector<16xf32>
    %10 = vector.multi_reduction <maximumf>, %8, %cst_8 [0] : vector<128x16xf32> to vector<16xf32>
    %11 = vector.shape_cast %10 : vector<16xf32> to vector<1x16xf32>
    %12 = arith.maximumf %9, %11 : vector<1x16xf32>
    %13 = arith.subf %9, %12 : vector<1x16xf32>
    %14 = math.exp %13 : vector<1x16xf32>
    %15 = vector.broadcast %12 : vector<1x16xf32> to vector<128x16xf32>
    %16 = arith.subf %8, %15 : vector<128x16xf32>
    %17 = math.exp %16 : vector<128x16xf32>
    %c0_9 = arith.constant 0 : index
    %c0_10 = arith.constant 0 : index
    %18 = vector.load %arg7[%c0_9, %c0_10] : memref<1x16xf32, #tpu.memory_space<vmem>>, vector<1x16xf32>
    %19 = arith.mulf %14, %18 : vector<1x16xf32>
    %cst_11 = arith.constant dense<0.000000e+00> : vector<16xf32>
    %20 = vector.multi_reduction <add>, %17, %cst_11 [0] : vector<128x16xf32> to vector<16xf32>
    %21 = vector.shape_cast %20 : vector<16xf32> to vector<1x16xf32>
    %22 = arith.addf %19, %21 : vector<1x16xf32>
    %c0_12 = arith.constant 0 : index
    %c0_13 = arith.constant 0 : index
    %23 = vector.load %arg7[%c0_12, %c0_13] : memref<1x16xf32, #tpu.memory_space<vmem>>, vector<1x16xf32>
    tpu.vector_store %arg7[%c0_12, %c0_13], %22 {strides = array<i32>} : memref<1x16xf32, #tpu.memory_space<vmem>>, vector<1x16xf32>,
    %c0_14 = arith.constant 0 : index
    %c0_15 = arith.constant 0 : index
    %24 = vector.load %arg6[%c0_14, %c0_15] : memref<1x16xf32, #tpu.memory_space<vmem>>, vector<1x16xf32>
    tpu.vector_store %arg6[%c0_14, %c0_15], %12 {strides = array<i32>} : memref<1x16xf32, #tpu.memory_space<vmem>>, vector<1x16xf32>,
    %c2_i32 = arith.constant 2 : i32
    %25 = arith.cmpi eq, %arg1, %c2_i32 : i32
    %26 = arith.extui %25 : i1 to i32
    %c0_i32_16 = arith.constant 0 : i32
    %27 = arith.cmpi ne, %26, %c0_i32_16 : i32
    scf.if %27 {
      %c0_17 = arith.constant 0 : index
      %c0_18 = arith.constant 0 : index
      %28 = vector.load %arg6[%c0_17, %c0_18] : memref<1x16xf32, #tpu.memory_space<vmem>>, vector<1x16xf32>
      %c0_19 = arith.constant 0 : index
      %c0_20 = arith.constant 0 : index
      %29 = vector.load %arg7[%c0_19, %c0_20] : memref<1x16xf32, #tpu.memory_space<vmem>>, vector<1x16xf32>
      %30 = math.log %29 : vector<1x16xf32>
      %31 = arith.addf %28, %30 : vector<1x16xf32>
      %32 = vector.shape_cast %31 : vector<1x16xf32> to vector<1x1x16xf32>
      %c0_21 = arith.constant 0 : index
      %c0_22 = arith.constant 0 : index
      %c0_23 = arith.constant 0 : index
      %33 = vector.load %arg5[%c0_21, %c0_22, %c0_23] : memref<1x1x16xf32, #tpu.memory_space<vmem>>, vector<1x1x16xf32>
      tpu.vector_store %arg5[%c0_21, %c0_22, %c0_23], %32 {strides = array<i32>} : memref<1x1x16xf32, #tpu.memory_space<vmem>>, vector<1x1x16xf32>,
    } else {
    }
    return
  }
  func.func @transform_0(%arg0: i32, %arg1: i32) -> (i32, i32) {
    %c0_i32 = arith.constant 0 : i32
    %c0_i32_0 = arith.constant 0 : i32
    return %arg0, %c0_i32 : i32, i32
  }
  func.func @transform_1(%arg0: i32, %arg1: i32) -> (i32, i32) {
    %c0_i32 = arith.constant 0 : i32
    %c0_i32_0 = arith.constant 0 : i32
    return %arg1, %c0_i32 : i32, i32
  }
  func.func @transform_2(%arg0: i32, %arg1: i32) -> (i32, i32) {
    %c0_i32 = arith.constant 0 : i32
    %c0_i32_0 = arith.constant 0 : i32
    return %arg1, %c0_i32 : i32, i32
  }
  func.func @transform_3(%arg0: i32, %arg1: i32) -> (i32, i32, i32) {
    %c0_i32 = arith.constant 0 : i32
    %c0_i32_0 = arith.constant 0 : i32
    %c0_i32_1 = arith.constant 0 : i32
    return %arg0, %c0_i32, %c0_i32_0 : i32, i32, i32
  }
}

</mosaic_0001>

<llo_original>
// kernel: tpu_custom_call.1
$region0: #{tpu_custom_call.1}
  #allocation0 [shape = 'u32[]', space=smem, size = 0x4, offset = 0x4, fixed_abs, tag = 'smem constant byte address 0x4 - core index']
  #allocation1 [shape = 'u32[144,128]{1,0:T(1,128)}', space=vmem, size = 0x12000, scoped, tag = 'internal scratch']
  #allocation2 [shape = 'f32[1,16]{1,0:T(1,128)}', space=vmem, size = 0x200, scoped, tag = 'scratch operand']
  #allocation3 [shape = 'f32[1,16]{1,0:T(1,128)}', space=vmem, size = 0x200, scoped, tag = 'scratch operand']
  %s0 = inlined_call_operand.vmem [shape: bf16[32,128], index: 0, kind: input, shape index: {}]
  %s1 = inlined_call_operand.vmem [shape: bf16[384,128], index: 1, kind: input, shape index: {}]
  %s2 = inlined_call_operand.vmem [shape: f32[384,1], index: 2, kind: input, shape index: {}]
  %s3 = inlined_call_operand.hbm [shape: f32[2,1,16], index: 3, kind: output, shape index: {}]
  %s4 = sld [smem:[#allocation0]]
  $region53: #{tpu_custom_call.1} parent=0
    _
  %s6 = ssub.s32 1, %s4
  %s7 = scalar_select 0, %s6, %s4
  $region1: #{tpu_custom_call.1} parent=0
    #allocation4 [shape = 'u8[1024]{0}', space=vmem, size = 0x400, scoped, tag = 'output window, operand 0']
    #allocation5 [shape = 's32[2]{0}', space=sflag, size = 0x8, scoped, tag = 'scoped memory for tpu_custom_call.1']
    %8 = vsyncpa [#allocation5], 0
    %s9 = scalar_lea.sflag [#allocation5], 1
    %10 = vsyncpa %s9, 0
    loop: start=0, step=1, limit=8
    $region2: #{tpu_custom_call.1} parent=1 // loop_pre_header
      _
    $region3: #{tpu_custom_call.1} parent=1 // loop_header
      %s12 = sphi 0, %s16
      %p13 = scmp.ge.s32.totalorder %s12, 8
      %s19 = sphi 0, %s31
      %s20 = sphi 0, %s27
      %s21 = sphi 0, %s19
      %s22 = sphi 0, %s20
      %s23 = sphi 0, %s21
      %s24 = sphi 0, %s22
      %s34 = sphi 0, %s36
      %s37 = sphi 0, %s34
      %s38 = sphi 0, %s37
      %s54 = sphi 0, %s38
      %s60 = sphi 0, %s62
      %s63 = sphi 0, %s60
      %s64 = sphi 0, %s63
      %s80 = sphi 0, %s64
      %s86 = sphi 0, %s88
      %s89 = sphi 0, %s86
      %s90 = sphi 0, %s89
      %s106 = sphi 0, %s90
      %s112 = sphi 0, %s114
      %s115 = sphi 0, %s112
      %s116 = sphi 0, %s115
      %s132 = sphi 0, %s116
    $region4: #{tpu_custom_call.1} parent=1 // loop_header_branch
      %15 = sbr.rel (%p13) target = $region8
    $region5: #{tpu_custom_call.1} parent=1 // loop_body
      %s17 = ssub.s32 %s12, 1
      %s18 = ssub.s32 %s12, 2
      %s25 = sadd.s32 1, %s20
      %p26 = scmp.ge.s32.totalorder %s25, 3
      %s27 = scalar_select %p26, 0, %s25
      %s28 = sadd.s32 1, %s19
      %s29 = scalar_select %p26, %s28, %s19
      %p30 = scmp.ge.s32.totalorder %s29, 2
      %s31 = scalar_select %p30, 0, %s29
      %s32 = ssub.s32 %s19, %s31
      %p33 = scmp.eq.s32.totalorder %s32, 0
      %s35 = sadd.s32 %s34, 1
      %s36 = scalar_select %p33, %s34, %s35
      %p39 = pneg %p33
      %p40 = scmp.eq.s32.totalorder %s12, 5
      %p41 = por %p39, %p40
      %p42 = scmp.ne.s32.totalorder %s34, %s37
      %p43 = scmp.eq.s32.totalorder %s12, 0
      %p44 = por %p42, %p43
      %p45 = scmp.ne.s32.totalorder %s34, %s37
      %p46 = scmp.eq.s32.totalorder %s17, 5
      %p47 = por %p45, %p46
      %p48 = scmp.ne.s32.totalorder %s37, %s38
      %p49 = scmp.eq.s32.totalorder %s17, 0
      %p50 = por %p48, %p49
      %p51 = scmp.ne.s32.totalorder %s37, %s38
      %p52 = scmp.eq.s32.totalorder %s18, 5
      %p53 = por %p51, %p52
      %p55 = scmp.ne.s32.totalorder %s38, %s54
      %p56 = scmp.eq.s32.totalorder %s18, 0
      %p57 = por %p55, %p56
      %s58 = ssub.s32 %s20, %s27
      %p59 = scmp.eq.s32.totalorder %s58, 0
      %s61 = sadd.s32 %s60, 1
      %s62 = scalar_select %p59, %s60, %s61
      %p65 = pneg %p59
      %p66 = scmp.eq.s32.totalorder %s12, 5
      %p67 = por %p65, %p66
      %p68 = scmp.ne.s32.totalorder %s60, %s63
      %p69 = scmp.eq.s32.totalorder %s12, 0
      %p70 = por %p68, %p69
      %p71 = scmp.ne.s32.totalorder %s60, %s63
      %p72 = scmp.eq.s32.totalorder %s17, 5
      %p73 = por %p71, %p72
      %p74 = scmp.ne.s32.totalorder %s63, %s64
      %p75 = scmp.eq.s32.totalorder %s17, 0
      %p76 = por %p74, %p75
      %p77 = scmp.ne.s32.totalorder %s63, %s64
      %p78 = scmp.eq.s32.totalorder %s18, 5
      %p79 = por %p77, %p78
      %p81 = scmp.ne.s32.totalorder %s64, %s80
      %p82 = scmp.eq.s32.totalorder %s18, 0
      %p83 = por %p81, %p82
      %s84 = ssub.s32 %s20, %s27
      %p85 = scmp.eq.s32.totalorder %s84, 0
      %s87 = sadd.s32 %s86, 1
      %s88 = scalar_select %p85, %s86, %s87
      %p91 = pneg %p85
      %p92 = scmp.eq.s32.totalorder %s12, 5
      %p93 = por %p91, %p92
      %p94 = scmp.ne.s32.totalorder %s86, %s89
      %p95 = scmp.eq.s32.totalorder %s12, 0
      %p96 = por %p94, %p95
      %p97 = scmp.ne.s32.totalorder %s86, %s89
      %p98 = scmp.eq.s32.totalorder %s17, 5
      %p99 = por %p97, %p98
      %p100 = scmp.ne.s32.totalorder %s89, %s90
      %p101 = scmp.eq.s32.totalorder %s17, 0
      %p102 = por %p100, %p101
      %p103 = scmp.ne.s32.totalorder %s89, %s90
      %p104 = scmp.eq.s32.totalorder %s18, 5
      %p105 = por %p103, %p104
      %p107 = scmp.ne.s32.totalorder %s90, %s106
      %p108 = scmp.eq.s32.totalorder %s18, 0
      %p109 = por %p107, %p108
      %s110 = ssub.s32 %s19, %s31
      %p111 = scmp.eq.s32.totalorder %s110, 0
      %s113 = sadd.s32 %s112, 1
      %s114 = scalar_select %p111, %s112, %s113
      %p117 = pneg %p111
      %p118 = scmp.eq.s32.totalorder %s12, 5
      %p119 = por %p117, %p118
      %p120 = scmp.ne.s32.totalorder %s112, %s115
      %p121 = scmp.eq.s32.totalorder %s12, 0
      %p122 = por %p120, %p121
      %p123 = scmp.ne.s32.totalorder %s112, %s115
      %p124 = scmp.eq.s32.totalorder %s17, 5
      %p125 = por %p123, %p124
      %p126 = scmp.ne.s32.totalorder %s115, %s116
      %p127 = scmp.eq.s32.totalorder %s17, 0
      %p128 = por %p126, %p127
      %p129 = scmp.ne.s32.totalorder %s115, %s116
      %p130 = scmp.eq.s32.totalorder %s18, 5
      %p131 = por %p129, %p130
      %p133 = scmp.ne.s32.totalorder %s116, %s132
      %p134 = scmp.eq.s32.totalorder %s18, 0
      %p135 = por %p133, %p134
      %p136 = scmp.le.s32.totalorder 1, %s12
      %p137 = scmp.lt.s32.totalorder %s12, 7
      %p138 = pnand %p136, %p137
      %p139 = pneg %p138
      // Predicated region
      $region9: #{tpu_custom_call.1} parent=5 // pred_check
        _
      $region10: #{tpu_custom_call.1} parent=5 // pred_check_branch
        %141 = sbr.rel (%p138) target = $region12
      $region11: #{tpu_custom_call.1} parent=5 // pred_region
        %s142 = ssub.s32 %s12, 1
      $region12: #{tpu_custom_call.1} parent=5 // pred_fallthru
        _
      %p143 = scmp.lt.s32.totalorder %s12, 6
      // Predicated region
      $region13: #{tpu_custom_call.1} parent=5 // pred_check
        %p144 = pneg %p143
      $region14: #{tpu_custom_call.1} parent=5 // pred_check_branch
        %146 = sbr.rel (%p144) target = $region16
      $region15: #{tpu_custom_call.1} parent=5 // pred_region
        // Predicated region
        $region17: #{tpu_custom_call.1} parent=15 // pred_check
          %p147 = pneg %p44
        $region18: #{tpu_custom_call.1} parent=15 // pred_check_branch
          %149 = sbr.rel (%p147) target = $region20
        $region19: #{tpu_custom_call.1} parent=15 // pred_region
          %s150 = smul.u32 2, %s19
          %p151 = scmp.lt.s32.totalorder %s150, 3
          %s152 = scalar_select %p151, %s150, 3
          %s153 = smul.addr %s152, 4
          %s154 = scalar_lea.vmem %s0, %s153
          %s155 = smul.u32 2, %s19
        $region20: #{tpu_custom_call.1} parent=15 // pred_fallthru
          _
        // Predicated region
        $region21: #{tpu_custom_call.1} parent=15 // pred_check
          %p156 = pneg %p70
        $region22: #{tpu_custom_call.1} parent=15 // pred_check_branch
          %158 = sbr.rel (%p156) target = $region24
        $region23: #{tpu_custom_call.1} parent=15 // pred_region
          %s159 = smul.u32 16, %s20
          %p160 = scmp.lt.s32.totalorder %s159, 47
          %s161 = scalar_select %p160, %s159, 47
          %s162 = smul.addr %s161, 4
          %s163 = scalar_lea.vmem %s1, %s162
          %s164 = smul.u32 16, %s20
        $region24: #{tpu_custom_call.1} parent=15 // pred_fallthru
          _
        // Predicated region
        $region25: #{tpu_custom_call.1} parent=15 // pred_check
          %p165 = pneg %p96
        $region26: #{tpu_custom_call.1} parent=15 // pred_check_branch
          %167 = sbr.rel (%p165) target = $region28
        $region27: #{tpu_custom_call.1} parent=15 // pred_region
          %s168 = smul.u32 16, %s20
          %p169 = scmp.lt.s32.totalorder %s168, 47
          %s170 = scalar_select %p169, %s168, 47
          %s171 = smul.addr %s170, 8
          %s172 = scalar_lea.vmem %s2, %s171
          %s173 = smul.u32 16, %s20
        $region28: #{tpu_custom_call.1} parent=15 // pred_fallthru
          _
      $region16: #{tpu_custom_call.1} parent=5 // pred_fallthru
        _
      %p174 = scmp.le.s32.totalorder 1, %s12
      %p175 = scmp.lt.s32.totalorder %s12, 7
      %p176 = pnand %p174, %p175
      %p177 = pneg %p176
      // Predicated region
      $region29: #{tpu_custom_call.1} parent=5 // pred_check
        _
      $region30: #{tpu_custom_call.1} parent=5 // pred_check_branch
        %179 = sbr.rel (%p176) target = $region32
      $region31: #{tpu_custom_call.1} parent=5 // pred_region
        %s180 = ssub.s32 %s12, 1
        %s181 = smul.u32 2, %s21
        %p182 = scmp.lt.s32.totalorder %s181, 3
        %s183 = scalar_select %p182, %s181, 3
        %s184 = smul.addr %s183, 4
        %s185 = scalar_lea.vmem %s0, %s184
        %p186 = pneg %p50
        %p187 = pneg %p47
        %s188 = smul.u32 16, %s22
        %p189 = scmp.lt.s32.totalorder %s188, 47
        %s190 = scalar_select %p189, %s188, 47
        %s191 = smul.addr %s190, 4
        %s192 = scalar_lea.vmem %s1, %s191
        %p193 = pneg %p76
        %p194 = pneg %p73
        %s195 = smul.u32 16, %s22
        %p196 = scmp.lt.s32.totalorder %s195, 47
        %s197 = scalar_select %p196, %s195, 47
        %s198 = smul.addr %s197, 8
        %s199 = scalar_lea.vmem %s2, %s198
        %p200 = pneg %p102
        %p201 = pneg %p99
        %p202 = pneg %p128
        %p203 = pneg %p125
        %s204 = sand.u32 %s115, 1
        %s205 = scalar_lea.sflag [#allocation5], %s204
        %s206 = sand.u32 %s115, 1
        %s207 = scalar_lea.vmem [#allocation4], %s206
        %s208 = smul.u32 2, %s21
        %p209 = scmp.lt.s32.totalorder %s208, 3
        %s210 = scalar_select %p209, %s208, 3
        %s211 = smul.addr %s210, 4
        %s212 = scalar_lea.vmem %s0, %s211
        %s213 = smul.u32 2, %s21
        %s214 = smul.u32 16, %s22
        %p215 = scmp.lt.s32.totalorder %s214, 47
        %s216 = scalar_select %p215, %s214, 47
        %s217 = smul.addr %s216, 4
        %s218 = scalar_lea.vmem %s1, %s217
        %s219 = smul.u32 16, %s22
        %s220 = smul.u32 16, %s22
        %p221 = scmp.lt.s32.totalorder %s220, 47
        %s222 = scalar_select %p221, %s220, 47
        %s223 = smul.addr %s222, 8
        %s224 = scalar_lea.vmem %s2, %s223
        %s225 = smul.u32 16, %s22
        %p227 = scmp.eq.s32.totalorder %s22, 0
        // Predicated region
        $region33: #{tpu_custom_call.1} parent=31 // pred_check
          %p228 = pneg %p227
        $region34: #{tpu_custom_call.1} parent=31 // pred_check_branch
          %230 = sbr.rel (%p228) target = $region36
        $region35: #{tpu_custom_call.1} parent=31 // pred_region
          %vm231 = vcmask 122880
          %232 = vst.msk [vmem:[#allocation2] sm:$0x1] %vm231, -1e+30
          %233 = vst.msk [vmem:[#allocation3] sm:$0x1] %vm231, 0.0
        $region36: #{tpu_custom_call.1} parent=31 // pred_fallthru
          _
        %v234 = vld [vmem:[%s218] sm:$0xf]
        %v235 = vld [vmem:[%s218 + $0x4] sm:$0xf]
        %v236 = vld [vmem:[%s218 + $0x8] sm:$0xf]
        %v237 = vld [vmem:[%s218 + $0xc] sm:$0xf]
        %v238 = vld [vmem:[%s218 + $0x10] sm:$0xf]
        %v239 = vld [vmem:[%s218 + $0x14] sm:$0xf]
        %v240 = vld [vmem:[%s218 + $0x18] sm:$0xf]
        %v241 = vld [vmem:[%s218 + $0x1c] sm:$0xf]
        %v242 = vld [vmem:[%s218 + $0x20] sm:$0xf]
        %v243 = vld [vmem:[%s218 + $0x24] sm:$0xf]
        %v244 = vld [vmem:[%s218 + $0x28] sm:$0xf]
        %v245 = vld [vmem:[%s218 + $0x2c] sm:$0xf]
        %v246 = vld [vmem:[%s218 + $0x30] sm:$0xf]
        %v247 = vld [vmem:[%s218 + $0x34] sm:$0xf]
        %v248 = vld [vmem:[%s218 + $0x38] sm:$0xf]
        %v249 = vld [vmem:[%s218 + $0x3c] sm:$0xf]
        %v250 = vld [vmem:[%s212] sm:$0xf]
        %v251 = vld [vmem:[%s212 + $0x4] sm:$0xf]
        %v252 = vld [vmem:[%s224] sm:$0xff]
        %v253 = vld [vmem:[%s224 + $0x8] sm:$0xff]
        %v254 = vld [vmem:[%s224 + $0x10] sm:$0xff]
        %v255 = vld [vmem:[%s224 + $0x18] sm:$0xff]
        %v256 = vld [vmem:[%s224 + $0x20] sm:$0xff]
        %v257 = vld [vmem:[%s224 + $0x28] sm:$0xff]
        %v258 = vld [vmem:[%s224 + $0x30] sm:$0xff]
        %v259 = vld [vmem:[%s224 + $0x38] sm:$0xff]
        %v260 = vld [vmem:[%s224 + $0x40] sm:$0xff]
        %v261 = vld [vmem:[%s224 + $0x48] sm:$0xff]
        %v262 = vld [vmem:[%s224 + $0x50] sm:$0xff]
        %v263 = vld [vmem:[%s224 + $0x58] sm:$0xff]
        %v264 = vld [vmem:[%s224 + $0x60] sm:$0xff]
        %v265 = vld [vmem:[%s224 + $0x68] sm:$0xff]
        %v266 = vld [vmem:[%s224 + $0x70] sm:$0xff]
        %v267 = vld [vmem:[%s224 + $0x78] sm:$0xff]
        %269 = vset.pattern.permute.xlu0 0
        %270 = vperm.xlu0 %269, %v252
        %v271 = vpop.permute.xlu0 %270
        %274 = vset.pattern.permute.xlu0 0
        %275 = vperm.xlu0 %274, %v253
        %v276 = vpop.permute.xlu0 %275
        %279 = vset.pattern.permute.xlu0 0
        %280 = vperm.xlu0 %279, %v254
        %v281 = vpop.permute.xlu0 %280
        %284 = vset.pattern.permute.xlu0 0
        %285 = vperm.xlu0 %284, %v255
        %v286 = vpop.permute.xlu0 %285
        %289 = vset.pattern.permute.xlu0 0
        %290 = vperm.xlu0 %289, %v256
        %v291 = vpop.permute.xlu0 %290
        %294 = vset.pattern.permute.xlu0 0
        %295 = vperm.xlu0 %294, %v257
        %v296 = vpop.permute.xlu0 %295
        %299 = vset.pattern.permute.xlu0 0
        %300 = vperm.xlu0 %299, %v258
        %v301 = vpop.permute.xlu0 %300
        %304 = vset.pattern.permute.xlu0 0
        %305 = vperm.xlu0 %304, %v259
        %v306 = vpop.permute.xlu0 %305
        %309 = vset.pattern.permute.xlu0 0
        %310 = vperm.xlu0 %309, %v260
        %v311 = vpop.permute.xlu0 %310
        %314 = vset.pattern.permute.xlu0 0
        %315 = vperm.xlu0 %314, %v261
        %v316 = vpop.permute.xlu0 %315
        %319 = vset.pattern.permute.xlu0 0
        %320 = vperm.xlu0 %319, %v262
        %v321 = vpop.permute.xlu0 %320
        %324 = vset.pattern.permute.xlu0 0
        %325 = vperm.xlu0 %324, %v263
        %v326 = vpop.permute.xlu0 %325
        %329 = vset.pattern.permute.xlu0 0
        %330 = vperm.xlu0 %329, %v264
        %v331 = vpop.permute.xlu0 %330
        %334 = vset.pattern.permute.xlu0 0
        %335 = vperm.xlu0 %334, %v265
        %v336 = vpop.permute.xlu0 %335
        %339 = vset.pattern.permute.xlu0 0
        %340 = vperm.xlu0 %339, %v266
        %v341 = vpop.permute.xlu0 %340
        %344 = vset.pattern.permute.xlu0 0
        %345 = vperm.xlu0 %344, %v267
        %v346 = vpop.permute.xlu0 %345
        %v364 = vunpack.c.l.b16 %v234
        %v365 = vunpack.c.l.b16 %v235
        %v366 = vunpack.c.l.b16 %v236
        %v367 = vunpack.c.l.b16 %v237
        %v368 = vunpack.c.l.b16 %v238
        %v369 = vunpack.c.l.b16 %v239
        %v370 = vunpack.c.l.b16 %v240
        %v371 = vunpack.c.l.b16 %v241
        %v372 = vunpack.c.l.b16 %v242
        %v373 = vunpack.c.l.b16 %v243
        %v374 = vunpack.c.l.b16 %v244
        %v375 = vunpack.c.l.b16 %v245
        %v376 = vunpack.c.l.b16 %v246
        %v377 = vunpack.c.l.b16 %v247
        %v378 = vunpack.c.l.b16 %v248
        %v379 = vunpack.c.l.b16 %v249
        %v380 = vpack.c.b16 %v365, %v364
        %v381 = vpack.c.b16 %v367, %v366
        %v382 = vpack.c.b16 %v369, %v368
        %v383 = vpack.c.b16 %v371, %v370
        %v384 = vpack.c.b16 %v373, %v372
        %v385 = vpack.c.b16 %v375, %v374
        %v386 = vpack.c.b16 %v377, %v376
        %v387 = vpack.c.b16 %v379, %v378
        %v398 = vunpack.c.l.b16 %v250
        %v399 = vunpack.c.l.b16 %v251
        %v400 = vpack.c.b16 %v399, %v398
        %402 = vmatprep.subr.bf16.mxu0 0
        %403 = vmatpush1.bf16.xpose.msra.mxu0 0
        %404 = vmatprep.subr.bf16.mxu0 0
        %405 = vmatpush1.bf16.xpose.msra.mxu0 0
        %406 = vmatprep.subr.bf16.mxu0 0
        %407 = vmatpush1.bf16.xpose.msra.mxu0 0
        %408 = vmatprep.subr.bf16.mxu0 0
        %409 = vmatpush1.bf16.xpose.msra.mxu0 0
        %410 = vmatprep.subr.bf16.mxu0 0
        %411 = vmatpush1.bf16.xpose.msra.mxu0 0
        %412 = vmatprep.subr.bf16.mxu0 0
        %413 = vmatpush1.bf16.xpose.msra.mxu0 0
        %414 = vmatprep.subr.bf16.mxu0 0
        %415 = vmatpush1.bf16.xpose.msra.mxu0 0
        %416 = vmatprep.subr.bf16.mxu0 0
        %417 = vmatpush1.bf16.xpose.msra.mxu0 %v400
        %418 = vmatprep.subr.bf16.mxu0 0
        %419 = vmatpush2.bf16.xpose.msra.mxu0 0
        %420 = vmatprep.subr.bf16.mxu0 0
        %421 = vmatpush2.bf16.xpose.msra.mxu0 0
        %422 = vmatprep.subr.bf16.mxu0 0
        %423 = vmatpush2.bf16.xpose.msra.mxu0 0
        %424 = vmatprep.subr.bf16.mxu0 0
        %425 = vmatpush2.bf16.xpose.msra.mxu0 0
        %426 = vmatprep.subr.bf16.mxu0 0
        %427 = vmatpush2.bf16.xpose.msra.mxu0 0
        %428 = vmatprep.subr.bf16.mxu0 0
        %429 = vmatpush2.bf16.xpose.msra.mxu0 0
        %430 = vmatprep.subr.bf16.mxu0 0
        %431 = vmatpush2.bf16.xpose.msra.mxu0 0
        %432 = vmatprep.subr.bf16.mxu0 0
        %433 = vmatpush2.bf16.xpose.msra.mxu0 0
        %434 = vmatprep.mubr.bf16.mxu0 0
        %435 = vmatmul.mubr.bf16.gmra.mxu0 %v380
        %v436 = vpop.f32.mrf.mxu0
        %v437 = vadd.f32 %v271, %v436
        %v438 = vpop.f32.mrf.mxu0
        %v439 = vpop.f32.mrf.mxu0
        %v440 = vadd.f32 %v276, %v439
        %v441 = vpop.f32.mrf.mxu0
        %442 = vmatprep.mubr.bf16.mxu0 0
        %443 = vmatmul.mubr.bf16.gmra.mxu0 %v381
        %v444 = vpop.f32.mrf.mxu0
        %v445 = vadd.f32 %v281, %v444
        %v446 = vpop.f32.mrf.mxu0
        %v447 = vpop.f32.mrf.mxu0
        %v448 = vadd.f32 %v286, %v447
        %v449 = vpop.f32.mrf.mxu0
        %450 = vmatprep.mubr.bf16.mxu0 0
        %451 = vmatmul.mubr.bf16.gmra.mxu0 %v382
        %v452 = vpop.f32.mrf.mxu0
        %v453 = vadd.f32 %v291, %v452
        %v454 = vpop.f32.mrf.mxu0
        %v455 = vpop.f32.mrf.mxu0
        %v456 = vadd.f32 %v296, %v455
        %v457 = vpop.f32.mrf.mxu0
        %458 = vmatprep.mubr.bf16.mxu0 0
        %459 = vmatmul.mubr.bf16.gmra.mxu0 %v383
        %v460 = vpop.f32.mrf.mxu0
        %v461 = vadd.f32 %v301, %v460
        %v462 = vpop.f32.mrf.mxu0
        %v463 = vpop.f32.mrf.mxu0
        %v464 = vadd.f32 %v306, %v463
        %v465 = vpop.f32.mrf.mxu0
        %466 = vmatprep.mubr.bf16.mxu0 0
        %467 = vmatmul.mubr.bf16.gmra.mxu0 %v384
        %v468 = vpop.f32.mrf.mxu0
        %v469 = vadd.f32 %v311, %v468
        %v470 = vpop.f32.mrf.mxu0
        %v471 = vpop.f32.mrf.mxu0
        %v472 = vadd.f32 %v316, %v471
        %v473 = vpop.f32.mrf.mxu0
        %474 = vmatprep.mubr.bf16.mxu0 0
        %475 = vmatmul.mubr.bf16.gmra.mxu0 %v385
        %v476 = vpop.f32.mrf.mxu0
        %v477 = vadd.f32 %v321, %v476
        %v478 = vpop.f32.mrf.mxu0
        %v479 = vpop.f32.mrf.mxu0
        %v480 = vadd.f32 %v326, %v479
        %v481 = vpop.f32.mrf.mxu0
        %482 = vmatprep.mubr.bf16.mxu0 0
        %483 = vmatmul.mubr.bf16.gmra.mxu0 %v386
        %v484 = vpop.f32.mrf.mxu0
        %v485 = vadd.f32 %v331, %v484
        %v486 = vpop.f32.mrf.mxu0
        %v487 = vpop.f32.mrf.mxu0
        %v488 = vadd.f32 %v336, %v487
        %v489 = vpop.f32.mrf.mxu0
        %490 = vmatprep.mubr.bf16.mxu0 0
        %491 = vmatmul.mubr.bf16.gmra.mxu0 %v387
        %v492 = vpop.f32.mrf.mxu0
        %v493 = vadd.f32 %v341, %v492
        %v494 = vpop.f32.mrf.mxu0
        %v495 = vpop.f32.mrf.mxu0
        %v496 = vadd.f32 %v346, %v495
        %v497 = vpop.f32.mrf.mxu0
        %498 = vdwg.mxu0
        %v499 = vld [vmem:[#allocation2] sm:$0x1]
        %vm500 = vcmask 130048
        %v501 = vsel %vm500, %v437, -inf
        %v502 = vsel %vm500, %v440, -inf
        %v503 = vsel %vm500, %v445, -inf
        %v504 = vsel %vm500, %v448, -inf
        %v505 = vsel %vm500, %v453, -inf
        %v506 = vmax.f32 %v501, %v505
        %v507 = vsel %vm500, %v456, -inf
        %v508 = vmax.f32 %v502, %v507
        %v509 = vsel %vm500, %v461, -inf
        %v510 = vmax.f32 %v503, %v509
        %v511 = vsel %vm500, %v464, -inf
        %v512 = vmax.f32 %v504, %v511
        %v513 = vsel %vm500, %v469, -inf
        %v514 = vmax.f32 %v506, %v513
        %v515 = vsel %vm500, %v472, -inf
        %v516 = vmax.f32 %v508, %v515
        %v517 = vsel %vm500, %v477, -inf
        %v518 = vmax.f32 %v510, %v517
        %v519 = vsel %vm500, %v480, -inf
        %v520 = vmax.f32 %v512, %v519
        %v521 = vsel %vm500, %v485, -inf
        %v522 = vmax.f32 %v514, %v521
        %v523 = vsel %vm500, %v488, -inf
        %v524 = vmax.f32 %v516, %v523
        %v525 = vsel %vm500, %v493, -inf
        %v526 = vmax.f32 %v518, %v525
        %v527 = vsel %vm500, %v496, -inf
        %v528 = vmax.f32 %v520, %v527
        %v529 = vmax.f32 %v522, %v524
        %v530 = vmax.f32 %v526, %v528
        %v531 = vmax.f32 %v529, %v530
        %v532 = vrot.slane %v531, 4
        %v533 = vmax.f32 %v531, %v532
        %v534 = vrot.slane %v533, 2
        %v535 = vmax.f32 %v533, %v534
        %v536 = vrot.slane %v535, 1
        %v537 = vmax.f32 %v535, %v536
        %v538 = vmax.f32 %v499, %v537
        %v539 = vsub.f32 %v499, %v538
        %v540 = vmul.f32 %v539, 1.442695
        %v541 = vpow.pop %v540
        %v543 = vlaneseq
        %v544 = vshrl.u32 %v543, 7
        %v545 = vsub.s32 0, %v544
        %v546 = vrot.slane %v538, %v545
        %v548 = vsub.f32 %v437, %v546
        %v549 = vsub.f32 %v440, %v546
        %v550 = vsub.f32 %v445, %v546
        %v551 = vsub.f32 %v448, %v546
        %v552 = vsub.f32 %v453, %v546
        %v553 = vsub.f32 %v456, %v546
        %v554 = vsub.f32 %v461, %v546
        %v555 = vsub.f32 %v464, %v546
        %v556 = vsub.f32 %v469, %v546
        %v557 = vsub.f32 %v472, %v546
        %v558 = vsub.f32 %v477, %v546
        %v559 = vsub.f32 %v480, %v546
        %v560 = vsub.f32 %v485, %v546
        %v561 = vsub.f32 %v488, %v546
        %v562 = vsub.f32 %v493, %v546
        %v563 = vsub.f32 %v496, %v546
        %v564 = vmul.f32 %v548, 1.442695
        %v565 = vpow.pop %v564
        %v566 = vmul.f32 %v549, 1.442695
        %v567 = vpow.pop %v566
        %v568 = vmul.f32 %v550, 1.442695
        %v569 = vpow.pop %v568
        %v570 = vmul.f32 %v551, 1.442695
        %v571 = vpow.pop %v570
        %v572 = vmul.f32 %v552, 1.442695
        %v573 = vpow.pop %v572
        %v574 = vmul.f32 %v553, 1.442695
        %v575 = vpow.pop %v574
        %v576 = vmul.f32 %v554, 1.442695
        %v577 = vpow.pop %v576
        %v578 = vmul.f32 %v555, 1.442695
        %v579 = vpow.pop %v578
        %v580 = vmul.f32 %v556, 1.442695
        %v581 = vpow.pop %v580
        %v582 = vmul.f32 %v557, 1.442695
        %v583 = vpow.pop %v582
        %v584 = vmul.f32 %v558, 1.442695
        %v585 = vpow.pop %v584
        %v586 = vmul.f32 %v559, 1.442695
        %v587 = vpow.pop %v586
        %v588 = vmul.f32 %v560, 1.442695
        %v589 = vpow.pop %v588
        %v590 = vmul.f32 %v561, 1.442695
        %v591 = vpow.pop %v590
        %v592 = vmul.f32 %v562, 1.442695
        %v593 = vpow.pop %v592
        %v594 = vmul.f32 %v563, 1.442695
        %v595 = vpow.pop %v594
        %v596 = vld [vmem:[#allocation3] sm:$0x1]
        %v597 = vmul.f32 %v541, %v596
        %v598 = vsel %vm500, %v565, 0.0
        %v599 = vsel %vm500, %v567, 0.0
        %v600 = vadd.f32 %v598, %v599
        %v601 = vsel %vm500, %v569, 0.0
        %v602 = vadd.f32 %v600, %v601
        %v603 = vsel %vm500, %v571, 0.0
        %v604 = vadd.f32 %v602, %v603
        %v605 = vsel %vm500, %v573, 0.0
        %v606 = vadd.f32 %v604, %v605
        %v607 = vsel %vm500, %v575, 0.0
        %v608 = vadd.f32 %v606, %v607
        %v609 = vsel %vm500, %v577, 0.0
        %v610 = vadd.f32 %v608, %v609
        %v611 = vsel %vm500, %v579, 0.0
        %v612 = vadd.f32 %v610, %v611
        %v613 = vsel %vm500, %v581, 0.0
        %v614 = vadd.f32 %v612, %v613
        %v615 = vsel %vm500, %v583, 0.0
        %v616 = vadd.f32 %v614, %v615
        %v617 = vsel %vm500, %v585, 0.0
        %v618 = vadd.f32 %v616, %v617
        %v619 = vsel %vm500, %v587, 0.0
        %v620 = vadd.f32 %v618, %v619
        %v621 = vsel %vm500, %v589, 0.0
        %v622 = vadd.f32 %v620, %v621
        %v623 = vsel %vm500, %v591, 0.0
        %v624 = vadd.f32 %v622, %v623
        %v625 = vsel %vm500, %v593, 0.0
        %v626 = vadd.f32 %v624, %v625
        %v627 = vsel %vm500, %v595, 0.0
        %v628 = vadd.f32 %v626, %v627
        %v629 = vrot.slane %v628, 4
        %v630 = vadd.f32 %v628, %v629
        %v631 = vrot.slane %v630, 2
        %v632 = vadd.f32 %v630, %v631
        %v633 = vrot.slane %v632, 1
        %v634 = vadd.f32 %v632, %v633
        %v635 = vadd.f32 %v597, %v634
        %vm636 = vcmask 122880
        %637 = vst.msk [vmem:[#allocation3] sm:$0x1] %vm636, %v635
        %638 = vst.msk [vmem:[#allocation2] sm:$0x1] %vm636, %v538
        %p639 = scmp.eq.s32.totalorder %s22, 2
        // Predicated region
        $region37: #{tpu_custom_call.1} parent=31 // pred_check
          %p640 = pneg %p639
        $region38: #{tpu_custom_call.1} parent=31 // pred_check_branch
          %642 = sbr.rel (%p640) target = $region40
        $region39: #{tpu_custom_call.1} parent=31 // pred_region
          %v643 = vld [vmem:[#allocation2] sm:$0x1]
          %v644 = vld [vmem:[#allocation3] sm:$0x1]
          %v645 = vlog2.pop %v644
          %v646 = vmul.f32 %v645, 0.6931472
          %v647 = vadd.f32 %v643, %v646
          %648 = vst.msk [vmem:[%s207] sm:$0x1] %vm636, %v647
        $region40: #{tpu_custom_call.1} parent=31 // pred_fallthru
          _
        %s649 = sand.u32 %s115, 1
        %s650 = scalar_lea.sflag [#allocation5], %s649
        %s651 = sand.u32 %s115, 1
        %s652 = scalar_lea.vmem [#allocation4], %s651
        // Predicated region
        $region41: #{tpu_custom_call.1} parent=31 // pred_check
          %p653 = pneg %p125
        $region42: #{tpu_custom_call.1} parent=31 // pred_check_branch
          %655 = sbr.rel (%p653) target = $region44
        $region43: #{tpu_custom_call.1} parent=31 // pred_region
          %s657 = ssub.s32 16, 16
          %658 = vsyncadd %s650, %s657
          %s659 = smul.addr %s21, 16
          %s660 = scalar_lea.hbm %s3, %s659
          %s662 = sshll.u32 %s652, 4
          %s663 = int_to_ptr.vmem [resolvable:$true] %s662
          %665 = dma.vmem_to_hbm [thread:$0]  %s663, 16, %s660, %s650
        $region44: #{tpu_custom_call.1} parent=31 // pred_fallthru
          _
      $region32: #{tpu_custom_call.1} parent=5 // pred_fallthru
        _
      %p666 = scmp.le.s32.totalorder 2, %s12
      // Predicated region
      $region45: #{tpu_custom_call.1} parent=5 // pred_check
        %p667 = pneg %p666
      $region46: #{tpu_custom_call.1} parent=5 // pred_check_branch
        %669 = sbr.rel (%p667) target = $region48
      $region47: #{tpu_custom_call.1} parent=5 // pred_region
        %s670 = ssub.s32 %s12, 2
        // Predicated region
        $region49: #{tpu_custom_call.1} parent=47 // pred_check
          %p671 = pneg %p131
        $region50: #{tpu_custom_call.1} parent=47 // pred_check_branch
          %673 = sbr.rel (%p671) target = $region52
        $region51: #{tpu_custom_call.1} parent=47 // pred_region
          %s674 = sand.u32 %s116, 1
          %s675 = scalar_lea.sflag [#allocation5], %s674
          %s676 = sand.u32 %s116, 1
          %s677 = scalar_lea.vmem [#allocation4], %s676
          %678 = dma.done %s675, 16
        $region52: #{tpu_custom_call.1} parent=47 // pred_fallthru
          _
      $region48: #{tpu_custom_call.1} parent=5 // pred_fallthru
        _
    $region6: #{tpu_custom_call.1} parent=1 // loop_footer
      %s16 = sadd.s32 1, %s12
    $region7: #{tpu_custom_call.1} parent=1 // loop_footer_branch
      %11 = sbr.rel target = $region3
    $region8: #{tpu_custom_call.1} parent=1 // loop_exit
      _
    %679 = vsyncpa [#allocation5], 1
    %s680 = scalar_lea.sflag [#allocation5], 1
    %681 = vsyncpa %s680, 1

</llo_original>
